<compile_context>
chip_gen: v7x
topology: tpu7x:2x2x1
jax: 0.10.0
libtpu: 0.0.40
codegen_flags: <defaults>
</compile_context>

<pallas_src>
import math
import jax
import jax.numpy as jnp
from jax.experimental import pallas as pl
from jax.experimental.pallas import tpu as pltpu


def smt_kernel(s_ref, w1_ref, b1_ref, w2_ref, b2_ref, w3_ref, b3_ref,
               g_ref, beta_ref, o_ref):
    # Single load of the input tile (bf16); reuse for residual + first GEMM.
    s_bf16 = s_ref[...]
    s0 = s_bf16.astype(jnp.float32)

    # linear_1 + ReLU  (bf16 MXU operands, f32 accumulation)
    x = jnp.dot(s_bf16, w1_ref[...],
                preferred_element_type=jnp.float32) + b1_ref[...]
    x = jnp.maximum(x, 0.0)
    # linear_2 + ReLU
    x = jnp.dot(x.astype(jnp.bfloat16), w2_ref[...],
                preferred_element_type=jnp.float32) + b2_ref[...]
    x = jnp.maximum(x, 0.0)
    # linear_3
    x = jnp.dot(x.astype(jnp.bfloat16), w3_ref[...],
                preferred_element_type=jnp.float32) + b3_ref[...]

    # residual + LayerNorm over last dim (f32, eps matches torch default 1e-5)
    x = x + s0
    mean = jnp.mean(x, axis=-1, keepdims=True)
    xc = x - mean
    var = jnp.mean(xc * xc, axis=-1, keepdims=True)
    xn = xc * jax.lax.rsqrt(var + 1e-5)
    o_ref[...] = (xn * g_ref[...] + beta_ref[...]).astype(o_ref.dtype)


def _round_up(x, m):
    return ((x + m - 1) // m) * m


def structure_module_transition(s, params, *, tm=512, out_dtype=jnp.bfloat16):
    """s: [rows, c].  params: dict of w1,b1,w2,b2,w3,b3,gamma,beta (f32, [in,out] weights).

    tm: maximum row tile (multiple of 8).  The actual tile is derived from a
    balanced tile count so no host-side padding is needed and the grid has at
    least 2 steps whenever rows >= 16 (keeps both v7x TensorCores busy).
    out_dtype: bf16 by default (halves output HBM traffic); pass jnp.float32
    if the consumer needs full-precision LayerNorm output.
    """
    rows, c = s.shape

    # --- tile selection (no host-side pad; ragged last block masked by Pallas)
    n_tiles = pl.cdiv(rows, tm)
    if rows >= 16:
        n_tiles = max(n_tiles, 2)          # >= 2 grid steps for v7x megacore
    tm_eff = max(8, _round_up(pl.cdiv(rows, n_tiles), 8))
    grid = pl.cdiv(rows, tm_eff)

    # --- stream activations / weights as bf16; biases & LN affine stay f32
    s_in = s.astype(jnp.bfloat16)
    w1 = params["w1"].astype(jnp.bfloat16)
    w2 = params["w2"].astype(jnp.bfloat16)
    w3 = params["w3"].astype(jnp.bfloat16)

    w_spec = pl.BlockSpec((c, c), lambda i: (0, 0))      # grid-invariant -> resident
    v_spec = pl.BlockSpec((1, c), lambda i: (0, 0))
    row_spec = pl.BlockSpec((tm_eff, c), lambda i: (i, 0))

    # VMEM budget: double-buffered bf16 I/O blocks + resident (double-buffered)
    # weights + f32 intermediates, with 2x headroom, capped below v7x's 64 MiB.
    blk_io = tm_eff * c * 2
    weight_bytes = 3 * c * c * 2 + 5 * c * 4
    vmem_est = 2 * 2 * blk_io + 2 * weight_bytes + 4 * tm_eff * c * 4
    vmem_limit = int(min(max(2 * vmem_est, 32 << 20), 48 << 20))

    out = pl.pallas_call(
        smt_kernel,
        out_shape=jax.ShapeDtypeStruct((rows, c), out_dtype),
        grid_spec=pltpu.PrefetchScalarGridSpec(
            num_scalar_prefetch=0,
            grid=(grid,),
            in_specs=[row_spec,
                      w_spec, v_spec,
                      w_spec, v_spec,
                      w_spec, v_spec,
                      v_spec, v_spec],
            out_specs=row_spec,
        ),
        compiler_params=pltpu.CompilerParams(
            dimension_semantics=("parallel",),
            vmem_limit_bytes=vmem_limit),
    )(s_in,
      w1, params["b1"],
      w2, params["b2"],
      w3, params["b3"],
      params["gamma"], params["beta"])
    return out


def init_params(key, c):
    # NOTE: the real module initializes linear_1/linear_2 with He truncated
    # normal, linear_3 with zeros ("final" init) and all biases to zero.
    # Here we use small random weights/biases everywhere so the correctness
    # check exercises the full datapath (w3=0 would make linear_1/2 irrelevant).
    k1, k2, k3, kb = jax.random.split(key, 4)
    std = math.sqrt(2.0 / c)
    w1 = jax.random.normal(k1, (c, c), jnp.float32) * std   # [in, out]
    w2 = jax.random.normal(k2, (c, c), jnp.float32) * std
    w3 = jax.random.normal(k3, (c, c), jnp.float32) * (std * 0.5)
    kb1, kb2, kb3 = jax.random.split(kb, 3)
    b1 = jax.random.normal(kb1, (1, c), jnp.float32) * 0.1
    b2 = jax.random.normal(kb2, (1, c), jnp.float32) * 0.1
    b3 = jax.random.normal(kb3, (1, c), jnp.float32) * 0.1
    return {
        "w1": w1, "b1": b1,
        "w2": w2, "b2": b2,
        "w3": w3, "b3": b3,
        "gamma": jnp.ones((1, c), jnp.float32),
        "beta": jnp.zeros((1, c), jnp.float32),
    }


def reference(s, p, out_dtype=jnp.bfloat16):
    """Pure-JAX reference with the same bf16-stream / f32-accumulate numerics.

    (Full-f32 PyTorch parity would need f32 GEMMs; bf16 operands with f32
    accumulation are the intended TPU numerics here.)"""
    s_bf16 = s.astype(jnp.bfloat16)
    s0 = s_bf16.astype(jnp.float32)
    x = jnp.dot(s_bf16, p["w1"].astype(jnp.bfloat16),
                preferred_element_type=jnp.float32) + p["b1"]
    x = jnp.maximum(x, 0.0)
    x = jnp.dot(x.astype(jnp.bfloat16), p["w2"].astype(jnp.bfloat16),
                preferred_element_type=jnp.float32) + p["b2"]
    x = jnp.maximum(x, 0.0)
    x = jnp.dot(x.astype(jnp.bfloat16), p["w3"].astype(jnp.bfloat16),
                preferred_element_type=jnp.float32) + p["b3"]
    x = x + s0
    mean = jnp.mean(x, axis=-1, keepdims=True)
    xc = x - mean
    var = jnp.mean(xc * xc, axis=-1, keepdims=True)
    out = xc * jax.lax.rsqrt(var + 1e-5) * p["gamma"] + p["beta"]
    return out.astype(out_dtype)


if __name__ == "__main__":
    key = jax.random.PRNGKey(0)
    # Small demo shapes; c=128 keeps the lane dimension dense (AlphaFold's
    # real c_s=384 is also a multiple of 128).
    batch, seq, c = 2, 8, 128
    k_in, k_p = jax.random.split(key)

    s = jax.random.normal(k_in, (batch, seq, c), jnp.float32)
    params = init_params(k_p, c)

    # Case 1: rows divisible by the tile.
    s_flat = s.reshape(batch * seq, c)          # glue reshape in plain JAX
    out_flat = structure_module_transition(s_flat, params)
    out = out_flat.reshape(batch, seq, c)
    jax.block_until_ready(out)

    ref = reference(s_flat, params).reshape(batch, seq, c)
    assert out.shape == ref.shape and out.dtype == ref.dtype
    err = jnp.max(jnp.abs(out.astype(jnp.float32) - ref.astype(jnp.float32)))
    assert jnp.allclose(out.astype(jnp.float32), ref.astype(jnp.float32),
                        atol=2e-2, rtol=2e-2), float(err)

    # Case 2: ragged row count (exercises the masked last block, no host pad).
    rows2 = 20
    s2 = jax.random.normal(jax.random.PRNGKey(1), (rows2, c), jnp.float32)
    out2 = structure_module_transition(s2, params)
    jax.block_until_ready(out2)
    ref2 = reference(s2, params)
    err2 = jnp.max(jnp.abs(out2.astype(jnp.float32) - ref2.astype(jnp.float32)))
    assert out2.shape == (rows2, c)
    assert jnp.allclose(out2.astype(jnp.float32), ref2.astype(jnp.float32),
                        atol=2e-2, rtol=2e-2), float(err2)

    print("KERNEL_OK")
</pallas_src>

<mosaic_0001>
module attributes {stable_mosaic.version = 11 : i64} {
  func.func @smt_kernel(%arg0: i32, %arg1: memref<8x128xbf16, #tpu.memory_space<vmem>>, %arg2: memref<128x128xbf16, #tpu.memory_space<vmem>>, %arg3: memref<1x128xf32, #tpu.memory_space<vmem>>, %arg4: memref<128x128xbf16, #tpu.memory_space<vmem>>, %arg5: memref<1x128xf32, #tpu.memory_space<vmem>>, %arg6: memref<128x128xbf16, #tpu.memory_space<vmem>>, %arg7: memref<1x128xf32, #tpu.memory_space<vmem>>, %arg8: memref<1x128xf32, #tpu.memory_space<vmem>>, %arg9: memref<1x128xf32, #tpu.memory_space<vmem>>, %arg10: memref<8x128xbf16, #tpu.memory_space<vmem>>) attributes {dimension_semantics = [#tpu.dimension_semantics<parallel>], iteration_bounds = array<i64: 2>, scalar_prefetch = 0 : i64, scratch_operands = 0 : i64, tpu.core_type = #tpu.core_type<tc>, window_params = [{transform_indices = @transform_0, window_bounds = array<i64: 8, 128>}, {pipeline_mode = #tpu.pipeline_mode<synchronous>, transform_indices = @transform_1, window_bounds = array<i64: 128, 128>}, {pipeline_mode = #tpu.pipeline_mode<synchronous>, transform_indices = @transform_2, window_bounds = array<i64: 1, 128>}, {pipeline_mode = #tpu.pipeline_mode<synchronous>, transform_indices = @transform_3, window_bounds = array<i64: 128, 128>}, {pipeline_mode = #tpu.pipeline_mode<synchronous>, transform_indices = @transform_4, window_bounds = array<i64: 1, 128>}, {pipeline_mode = #tpu.pipeline_mode<synchronous>, transform_indices = @transform_5, window_bounds = array<i64: 128, 128>}, {pipeline_mode = #tpu.pipeline_mode<synchronous>, transform_indices = @transform_6, window_bounds = array<i64: 1, 128>}, {pipeline_mode = #tpu.pipeline_mode<synchronous>, transform_indices = @transform_7, window_bounds = array<i64: 1, 128>}, {pipeline_mode = #tpu.pipeline_mode<synchronous>, transform_indices = @transform_8, window_bounds = array<i64: 1, 128>}, {transform_indices = @transform_9, window_bounds = array<i64: 8, 128>}]} {
    %c0 = arith.constant 0 : index
    %c0_0 = arith.constant 0 : index
    %0 = vector.load %arg1[%c0, %c0_0] : memref<8x128xbf16, #tpu.memory_space<vmem>>, vector<8x128xbf16>
    %1 = arith.extf %0 : vector<8x128xbf16> to vector<8x128xf32>
    %c0_1 = arith.constant 0 : index
    %c0_2 = arith.constant 0 : index
    %2 = vector.load %arg2[%c0_1, %c0_2] : memref<128x128xbf16, #tpu.memory_space<vmem>>, vector<128x128xbf16>
    %cst = arith.constant dense<0.000000e+00> : vector<8x128xf32>
    %3 = tpu.matmul %0, %2, %cst {dimension_numbers = #tpu.dot_dimension_numbers<[1], [0], [0], [1], [0, 0, 1, 1], [], []>} : vector<8x128xbf16>, vector<128x128xbf16>, vector<8x128xf32> -> vector<8x128xf32>
    %c0_3 = arith.constant 0 : index
    %c0_4 = arith.constant 0 : index
    %4 = vector.load %arg3[%c0_3, %c0_4] : memref<1x128xf32, #tpu.memory_space<vmem>>, vector<1x128xf32>
    %5 = vector.broadcast %4 : vector<1x128xf32> to vector<8x128xf32>
    %6 = arith.addf %3, %5 : vector<8x128xf32>
    %cst_5 = arith.constant 0.000000e+00 : f32
    %7 = vector.broadcast %cst_5 : f32 to vector<8x128xf32>
    %8 = arith.maximumf %6, %7 : vector<8x128xf32>
    %9 = arith.truncf %8 : vector<8x128xf32> to vector<8x128xbf16>
    %c0_6 = arith.constant 0 : index
    %c0_7 = arith.constant 0 : index
    %10 = vector.load %arg4[%c0_6, %c0_7] : memref<128x128xbf16, #tpu.memory_space<vmem>>, vector<128x128xbf16>
    %cst_8 = arith.constant dense<0.000000e+00> : vector<8x128xf32>
    %11 = tpu.matmul %9, %10, %cst_8 {dimension_numbers = #tpu.dot_dimension_numbers<[1], [0], [0], [1], [0, 0, 1, 1], [], []>} : vector<8x128xbf16>, vector<128x128xbf16>, vector<8x128xf32> -> vector<8x128xf32>
    %c0_9 = arith.constant 0 : index
    %c0_10 = arith.constant 0 : index
    %12 = vector.load %arg5[%c0_9, %c0_10] : memref<1x128xf32, #tpu.memory_space<vmem>>, vector<1x128xf32>
    %13 = vector.broadcast %12 : vector<1x128xf32> to vector<8x128xf32>
    %14 = arith.addf %11, %13 : vector<8x128xf32>
    %cst_11 = arith.constant 0.000000e+00 : f32
    %15 = vector.broadcast %cst_11 : f32 to vector<8x128xf32>
    %16 = arith.maximumf %14, %15 : vector<8x128xf32>
    %17 = arith.truncf %16 : vector<8x128xf32> to vector<8x128xbf16>
    %c0_12 = arith.constant 0 : index
    %c0_13 = arith.constant 0 : index
    %18 = vector.load %arg6[%c0_12, %c0_13] : memref<128x128xbf16, #tpu.memory_space<vmem>>, vector<128x128xbf16>
    %cst_14 = arith.constant dense<0.000000e+00> : vector<8x128xf32>
    %19 = tpu.matmul %17, %18, %cst_14 {dimension_numbers = #tpu.dot_dimension_numbers<[1], [0], [0], [1], [0, 0, 1, 1], [], []>} : vector<8x128xbf16>, vector<128x128xbf16>, vector<8x128xf32> -> vector<8x128xf32>
    %c0_15 = arith.constant 0 : index
    %c0_16 = arith.constant 0 : index
    %20 = vector.load %arg7[%c0_15, %c0_16] : memref<1x128xf32, #tpu.memory_space<vmem>>, vector<1x128xf32>
    %21 = vector.broadcast %20 : vector<1x128xf32> to vector<8x128xf32>
    %22 = arith.addf %19, %21 : vector<8x128xf32>
    %23 = arith.addf %22, %1 : vector<8x128xf32>
    %cst_17 = arith.constant dense<0.000000e+00> : vector<8xf32>
    %24 = vector.multi_reduction <add>, %23, %cst_17 [1] : vector<8x128xf32> to vector<8xf32>
    %25 = vector.shape_cast %24 : vector<8xf32> to vector<8x1xf32>
    %cst_18 = arith.constant 1.280000e+02 : f32
    %26 = vector.broadcast %cst_18 : f32 to vector<8x1xf32>
    %27 = arith.divf %25, %26 : vector<8x1xf32>
    %28 = vector.broadcast %27 : vector<8x1xf32> to vector<8x128xf32>
    %29 = arith.subf %23, %28 : vector<8x128xf32>
    %30 = arith.mulf %29, %29 : vector<8x128xf32>
    %cst_19 = arith.constant dense<0.000000e+00> : vector<8xf32>
    %31 = vector.multi_reduction <add>, %30, %cst_19 [1] : vector<8x128xf32> to vector<8xf32>
    %32 = vector.shape_cast %31 : vector<8xf32> to vector<8x1xf32>
    %cst_20 = arith.constant 1.280000e+02 : f32
    %33 = vector.broadcast %cst_20 : f32 to vector<8x1xf32>
    %34 = arith.divf %32, %33 : vector<8x1xf32>
    %cst_21 = arith.constant 9.99999974E-6 : f32
    %35 = vector.broadcast %cst_21 : f32 to vector<8x1xf32>
    %36 = arith.addf %34, %35 : vector<8x1xf32>
    %37 = math.rsqrt %36 : vector<8x1xf32>
    %38 = vector.broadcast %37 : vector<8x1xf32> to vector<8x128xf32>
    %39 = arith.mulf %29, %38 : vector<8x128xf32>
    %c0_22 = arith.constant 0 : index
    %c0_23 = arith.constant 0 : index
    %40 = vector.load %arg8[%c0_22, %c0_23] : memref<1x128xf32, #tpu.memory_space<vmem>>, vector<1x128xf32>
    %41 = vector.broadcast %40 : vector<1x128xf32> to vector<8x128xf32>
    %42 = arith.mulf %39, %41 : vector<8x128xf32>
    %c0_24 = arith.constant 0 : index
    %c0_25 = arith.constant 0 : index
    %43 = vector.load %arg9[%c0_24, %c0_25] : memref<1x128xf32, #tpu.memory_space<vmem>>, vector<1x128xf32>
    %44 = vector.broadcast %43 : vector<1x128xf32> to vector<8x128xf32>
    %45 = arith.addf %42, %44 : vector<8x128xf32>
    %46 = arith.truncf %45 : vector<8x128xf32> to vector<8x128xbf16>
    %c0_26 = arith.constant 0 : index
    %c0_27 = arith.constant 0 : index
    %47 = vector.load %arg10[%c0_26, %c0_27] : memref<8x128xbf16, #tpu.memory_space<vmem>>, vector<8x128xbf16>
    tpu.vector_store %arg10[%c0_26, %c0_27], %46 {strides = array<i32>} : memref<8x128xbf16, #tpu.memory_space<vmem>>, vector<8x128xbf16>,
    return
  }
  func.func @transform_0(%arg0: i32) -> (i32, i32) {
    %c0_i32 = arith.constant 0 : i32
    %c0_i32_0 = arith.constant 0 : i32
    return %arg0, %c0_i32 : i32, i32
  }
  func.func @transform_1(%arg0: i32) -> (i32, i32) {
    %c0_i32 = arith.constant 0 : i32
    %c0_i32_0 = arith.constant 0 : i32
    %c0_i32_1 = arith.constant 0 : i32
    return %c0_i32, %c0_i32_0 : i32, i32
  }
  func.func @transform_2(%arg0: i32) -> (i32, i32) {
    %c0_i32 = arith.constant 0 : i32
    %c0_i32_0 = arith.constant 0 : i32
    %c0_i32_1 = arith.constant 0 : i32
    return %c0_i32, %c0_i32_0 : i32, i32
  }
  func.func @transform_3(%arg0: i32) -> (i32, i32) {
    %c0_i32 = arith.constant 0 : i32
    %c0_i32_0 = arith.constant 0 : i32
    %c0_i32_1 = arith.constant 0 : i32
    return %c0_i32, %c0_i32_0 : i32, i32
  }
  func.func @transform_4(%arg0: i32) -> (i32, i32) {
    %c0_i32 = arith.constant 0 : i32
    %c0_i32_0 = arith.constant 0 : i32
    %c0_i32_1 = arith.constant 0 : i32
    return %c0_i32, %c0_i32_0 : i32, i32
  }
  func.func @transform_5(%arg0: i32) -> (i32, i32) {
    %c0_i32 = arith.constant 0 : i32
    %c0_i32_0 = arith.constant 0 : i32
    %c0_i32_1 = arith.constant 0 : i32
    return %c0_i32, %c0_i32_0 : i32, i32
  }
  func.func @transform_6(%arg0: i32) -> (i32, i32) {
    %c0_i32 = arith.constant 0 : i32
    %c0_i32_0 = arith.constant 0 : i32
    %c0_i32_1 = arith.constant 0 : i32
    return %c0_i32, %c0_i32_0 : i32, i32
  }
  func.func @transform_7(%arg0: i32) -> (i32, i32) {
    %c0_i32 = arith.constant 0 : i32
    %c0_i32_0 = arith.constant 0 : i32
    %c0_i32_1 = arith.constant 0 : i32
    return %c0_i32, %c0_i32_0 : i32, i32
  }
  func.func @transform_8(%arg0: i32) -> (i32, i32) {
    %c0_i32 = arith.constant 0 : i32
    %c0_i32_0 = arith.constant 0 : i32
    %c0_i32_1 = arith.constant 0 : i32
    return %c0_i32, %c0_i32_0 : i32, i32
  }
  func.func @transform_9(%arg0: i32) -> (i32, i32) {
    %c0_i32 = arith.constant 0 : i32
    %c0_i32_0 = arith.constant 0 : i32
    return %arg0, %c0_i32 : i32, i32
  }
}

</mosaic_0001>

<llo_original>
// kernel: tpu_custom_call.1
$region0: #{tpu_custom_call.1}
  #allocation0 [shape = 'u32[]', space=smem, size = 0x4, offset = 0x4, fixed_abs, tag = 'smem constant byte address 0x4 - core index']
  #allocation1 [shape = 'u32[144,128]{1,0:T(1,128)}', space=vmem, size = 0x12000, scoped, tag = 'internal scratch']
  %s0 = inlined_call_operand.hbm [shape: bf16[16,128], index: 0, kind: input, shape index: {}]
  %s1 = inlined_call_operand.hbm [shape: bf16[128,128], index: 1, kind: input, shape index: {}]
  %s2 = inlined_call_operand.vmem [shape: f32[1,128], index: 2, kind: input, shape index: {}]
  %s3 = inlined_call_operand.hbm [shape: bf16[128,128], index: 3, kind: input, shape index: {}]
  %s4 = inlined_call_operand.vmem [shape: f32[1,128], index: 4, kind: input, shape index: {}]
  %s5 = inlined_call_operand.hbm [shape: bf16[128,128], index: 5, kind: input, shape index: {}]
  %s6 = inlined_call_operand.vmem [shape: f32[1,128], index: 6, kind: input, shape index: {}]
  %s7 = inlined_call_operand.vmem [shape: f32[1,128], index: 7, kind: input, shape index: {}]
  %s8 = inlined_call_operand.vmem [shape: f32[1,128], index: 8, kind: input, shape index: {}]
  %s9 = inlined_call_operand.hbm [shape: bf16[16,128], index: 9, kind: output, shape index: {}]
  %s10 = sld [smem:[#allocation0]]
  $region85: #{tpu_custom_call.1} parent=0
    _
  %s12 = ssub.s32 1, %s10
  %s13 = scalar_select 0, %s12, %s10
  $region1: #{tpu_custom_call.1} parent=0
    #allocation2 [shape = 'u8[4096]{0}', space=vmem, size = 0x1000, scoped, tag = 'input window, operand 0']
    #allocation3 [shape = 's32[2]{0}', space=sflag, size = 0x8, scoped, tag = 'scoped memory for tpu_custom_call.1']
    #allocation4 [shape = 's32[2]{0}', space=sflag, size = 0x8, scoped, tag = 'scoped memory for tpu_custom_call.1']
    #allocation5 [shape = 'u8[32768]{0}', space=vmem, size = 0x8000, scoped, tag = 'input window, operand 1, single buffered']
    #allocation6 [shape = 's32[1]{0}', space=sflag, size = 0x4, scoped, tag = 'scoped memory for tpu_custom_call.1']
    #allocation7 [shape = 'u8[32768]{0}', space=vmem, size = 0x8000, scoped, tag = 'input window, operand 3, single buffered']
    #allocation8 [shape = 'u8[32768]{0}', space=vmem, size = 0x8000, scoped, tag = 'input window, operand 5, single buffered']
    #allocation9 [shape = 's32[1]{0}', space=sflag, size = 0x4, scoped, tag = 'scoped memory for tpu_custom_call.1']
    #allocation10 [shape = 'u8[4096]{0}', space=vmem, size = 0x1000, scoped, tag = 'output window, operand 0']
    %14 = vsyncpa [#allocation3], 0
    %s15 = scalar_lea.sflag [#allocation3], 1
    %16 = vsyncpa %s15, 0
    %17 = vsyncpa [#allocation6], 0
    %18 = vsyncpa [#allocation9], 0
    %19 = vsyncpa [#allocation4], 0
    %s20 = scalar_lea.sflag [#allocation4], 1
    %21 = vsyncpa %s20, 0
    loop: start=0, step=1, limit=4
    $region2: #{tpu_custom_call.1} parent=1 // loop_pre_header
      _
    $region3: #{tpu_custom_call.1} parent=1 // loop_header
      %s23 = sphi 0, %s27
      %p24 = scmp.ge.s32.totalorder %s23, 4
      %s33 = sphi 0, %s35
      %s36 = sphi 0, %s33
      %s37 = sphi 0, %s36
      %s53 = sphi 0, %s37
      %s57 = sphi 0, %s57
      %s59 = sphi 0, %s57
      %s60 = sphi 0, %s59
      %s74 = sphi 0, %s60
      %s78 = sphi 0, %s78
      %s80 = sphi 0, %s78
      %s81 = sphi 0, %s80
      %s95 = sphi 0, %s81
      %s99 = sphi 0, %s99
      %s101 = sphi 0, %s99
      %s102 = sphi 0, %s101
      %s116 = sphi 0, %s102
      %s120 = sphi 0, %s120
      %s122 = sphi 0, %s120
      %s123 = sphi 0, %s122
      %s137 = sphi 0, %s123
      %s141 = sphi 0, %s141
      %s143 = sphi 0, %s141
      %s144 = sphi 0, %s143
      %s158 = sphi 0, %s144
      %s162 = sphi 0, %s162
      %s164 = sphi 0, %s162
      %s165 = sphi 0, %s164
      %s179 = sphi 0, %s165
      %s183 = sphi 0, %s183
      %s185 = sphi 0, %s183
      %s186 = sphi 0, %s185
      %s200 = sphi 0, %s186
      %s204 = sphi 0, %s204
      %s206 = sphi 0, %s204
      %s207 = sphi 0, %s206
      %s221 = sphi 0, %s207
      %s227 = sphi 0, %s229
      %s230 = sphi 0, %s227
      %s231 = sphi 0, %s230
      %s247 = sphi 0, %s231
    $region4: #{tpu_custom_call.1} parent=1 // loop_header_branch
      %26 = sbr.rel (%p24) target = $region8
    $region5: #{tpu_custom_call.1} parent=1 // loop_body
      %s28 = ssub.s32 %s23, 1
      %s29 = ssub.s32 %s23, 2
      %s30 = sadd.s32 %s23, 1
      %s31 = ssub.s32 %s23, %s30
      %p32 = scmp.eq.s32.totalorder %s31, 0
      %s34 = sadd.s32 %s33, 1
      %s35 = scalar_select %p32, %s33, %s34
      %p38 = pneg %p32
      %p39 = scmp.eq.s32.totalorder %s23, 1
      %p40 = por %p38, %p39
      %p41 = scmp.ne.s32.totalorder %s33, %s36
      %p42 = scmp.eq.s32.totalorder %s23, 0
      %p43 = por %p41, %p42
      %p44 = scmp.ne.s32.totalorder %s33, %s36
      %p45 = scmp.eq.s32.totalorder %s28, 1
      %p46 = por %p44, %p45
      %p47 = scmp.ne.s32.totalorder %s36, %s37
      %p48 = scmp.eq.s32.totalorder %s28, 0
      %p49 = por %p47, %p48
      %p50 = scmp.ne.s32.totalorder %s36, %s37
      %p51 = scmp.eq.s32.totalorder %s29, 1
      %p52 = por %p50, %p51
      %p54 = scmp.ne.s32.totalorder %s37, %s53
      %p55 = scmp.eq.s32.totalorder %s29, 0
      %p56 = por %p54, %p55
      %s58 = sadd.s32 %s57, 1
      %p61 = scmp.eq.s32.totalorder %s23, 1
      %p62 = scmp.ne.s32.totalorder %s57, %s59
      %p63 = scmp.eq.s32.totalorder %s23, 0
      %p64 = por %p62, %p63
      %p65 = scmp.ne.s32.totalorder %s57, %s59
      %p66 = scmp.eq.s32.totalorder %s28, 1
      %p67 = por %p65, %p66
      %p68 = scmp.ne.s32.totalorder %s59, %s60
      %p69 = scmp.eq.s32.totalorder %s28, 0
      %p70 = por %p68, %p69
      %p71 = scmp.ne.s32.totalorder %s59, %s60
      %p72 = scmp.eq.s32.totalorder %s29, 1
      %p73 = por %p71, %p72
      %p75 = scmp.ne.s32.totalorder %s60, %s74
      %p76 = scmp.eq.s32.totalorder %s29, 0
      %p77 = por %p75, %p76
      %s79 = sadd.s32 %s78, 1
      %p82 = scmp.eq.s32.totalorder %s23, 1
      %p83 = scmp.ne.s32.totalorder %s78, %s80
      %p84 = scmp.eq.s32.totalorder %s23, 0
      %p85 = por %p83, %p84
      %p86 = scmp.ne.s32.totalorder %s78, %s80
      %p87 = scmp.eq.s32.totalorder %s28, 1
      %p88 = por %p86, %p87
      %p89 = scmp.ne.s32.totalorder %s80, %s81
      %p90 = scmp.eq.s32.totalorder %s28, 0
      %p91 = por %p89, %p90
      %p92 = scmp.ne.s32.totalorder %s80, %s81
      %p93 = scmp.eq.s32.totalorder %s29, 1
      %p94 = por %p92, %p93
      %p96 = scmp.ne.s32.totalorder %s81, %s95
      %p97 = scmp.eq.s32.totalorder %s29, 0
      %p98 = por %p96, %p97
      %s100 = sadd.s32 %s99, 1
      %p103 = scmp.eq.s32.totalorder %s23, 1
      %p104 = scmp.ne.s32.totalorder %s99, %s101
      %p105 = scmp.eq.s32.totalorder %s23, 0
      %p106 = por %p104, %p105
      %p107 = scmp.ne.s32.totalorder %s99, %s101
      %p108 = scmp.eq.s32.totalorder %s28, 1
      %p109 = por %p107, %p108
      %p110 = scmp.ne.s32.totalorder %s101, %s102
      %p111 = scmp.eq.s32.totalorder %s28, 0
      %p112 = por %p110, %p111
      %p113 = scmp.ne.s32.totalorder %s101, %s102
      %p114 = scmp.eq.s32.totalorder %s29, 1
      %p115 = por %p113, %p114
      %p117 = scmp.ne.s32.totalorder %s102, %s116
      %p118 = scmp.eq.s32.totalorder %s29, 0
      %p119 = por %p117, %p118
      %s121 = sadd.s32 %s120, 1
      %p124 = scmp.eq.s32.totalorder %s23, 1
      %p125 = scmp.ne.s32.totalorder %s120, %s122
      %p126 = scmp.eq.s32.totalorder %s23, 0
      %p127 = por %p125, %p126
      %p128 = scmp.ne.s32.totalorder %s120, %s122
      %p129 = scmp.eq.s32.totalorder %s28, 1
      %p130 = por %p128, %p129
      %p131 = scmp.ne.s32.totalorder %s122, %s123
      %p132 = scmp.eq.s32.totalorder %s28, 0
      %p133 = por %p131, %p132
      %p134 = scmp.ne.s32.totalorder %s122, %s123
      %p135 = scmp.eq.s32.totalorder %s29, 1
      %p136 = por %p134, %p135
      %p138 = scmp.ne.s32.totalorder %s123, %s137
      %p139 = scmp.eq.s32.totalorder %s29, 0
      %p140 = por %p138, %p139
      %s142 = sadd.s32 %s141, 1
      %p145 = scmp.eq.s32.totalorder %s23, 1
      %p146 = scmp.ne.s32.totalorder %s141, %s143
      %p147 = scmp.eq.s32.totalorder %s23, 0
      %p148 = por %p146, %p147
      %p149 = scmp.ne.s32.totalorder %s141, %s143
      %p150 = scmp.eq.s32.totalorder %s28, 1
      %p151 = por %p149, %p150
      %p152 = scmp.ne.s32.totalorder %s143, %s144
      %p153 = scmp.eq.s32.totalorder %s28, 0
      %p154 = por %p152, %p153
      %p155 = scmp.ne.s32.totalorder %s143, %s144
      %p156 = scmp.eq.s32.totalorder %s29, 1
      %p157 = por %p155, %p156
      %p159 = scmp.ne.s32.totalorder %s144, %s158
      %p160 = scmp.eq.s32.totalorder %s29, 0
      %p161 = por %p159, %p160
      %s163 = sadd.s32 %s162, 1
      %p166 = scmp.eq.s32.totalorder %s23, 1
      %p167 = scmp.ne.s32.totalorder %s162, %s164
      %p168 = scmp.eq.s32.totalorder %s23, 0
      %p169 = por %p167, %p168
      %p170 = scmp.ne.s32.totalorder %s162, %s164
      %p171 = scmp.eq.s32.totalorder %s28, 1
      %p172 = por %p170, %p171
      %p173 = scmp.ne.s32.totalorder %s164, %s165
      %p174 = scmp.eq.s32.totalorder %s28, 0
      %p175 = por %p173, %p174
      %p176 = scmp.ne.s32.totalorder %s164, %s165
      %p177 = scmp.eq.s32.totalorder %s29, 1
      %p178 = por %p176, %p177
      %p180 = scmp.ne.s32.totalorder %s165, %s179
      %p181 = scmp.eq.s32.totalorder %s29, 0
      %p182 = por %p180, %p181
      %s184 = sadd.s32 %s183, 1
      %p187 = scmp.eq.s32.totalorder %s23, 1
      %p188 = scmp.ne.s32.totalorder %s183, %s185
      %p189 = scmp.eq.s32.totalorder %s23, 0
      %p190 = por %p188, %p189
      %p191 = scmp.ne.s32.totalorder %s183, %s185
      %p192 = scmp.eq.s32.totalorder %s28, 1
      %p193 = por %p191, %p192
      %p194 = scmp.ne.s32.totalorder %s185, %s186
      %p195 = scmp.eq.s32.totalorder %s28, 0
      %p196 = por %p194, %p195
      %p197 = scmp.ne.s32.totalorder %s185, %s186
      %p198 = scmp.eq.s32.totalorder %s29, 1
      %p199 = por %p197, %p198
      %p201 = scmp.ne.s32.totalorder %s186, %s200
      %p202 = scmp.eq.s32.totalorder %s29, 0
      %p203 = por %p201, %p202
      %s205 = sadd.s32 %s204, 1
      %p208 = scmp.eq.s32.totalorder %s23, 1
      %p209 = scmp.ne.s32.totalorder %s204, %s206
      %p210 = scmp.eq.s32.totalorder %s23, 0
      %p211 = por %p209, %p210
      %p212 = scmp.ne.s32.totalorder %s204, %s206
      %p213 = scmp.eq.s32.totalorder %s28, 1
      %p214 = por %p212, %p213
      %p215 = scmp.ne.s32.totalorder %s206, %s207
      %p216 = scmp.eq.s32.totalorder %s28, 0
      %p217 = por %p215, %p216
      %p218 = scmp.ne.s32.totalorder %s206, %s207
      %p219 = scmp.eq.s32.totalorder %s29, 1
      %p220 = por %p218, %p219
      %p222 = scmp.ne.s32.totalorder %s207, %s221
      %p223 = scmp.eq.s32.totalorder %s29, 0
      %p224 = por %p222, %p223
      %s225 = ssub.s32 %s23, %s30
      %p226 = scmp.eq.s32.totalorder %s225, 0
      %s228 = sadd.s32 %s227, 1
      %s229 = scalar_select %p226, %s227, %s228
      %p232 = pneg %p226
      %p233 = scmp.eq.s32.totalorder %s23, 1
      %p234 = por %p232, %p233
      %p235 = scmp.ne.s32.totalorder %s227, %s230
      %p236 = scmp.eq.s32.totalorder %s23, 0
      %p237 = por %p235, %p236
      %p238 = scmp.ne.s32.totalorder %s227, %s230
      %p239 = scmp.eq.s32.totalorder %s28, 1
      %p240 = por %p238, %p239
      %p241 = scmp.ne.s32.totalorder %s230, %s231
      %p242 = scmp.eq.s32.totalorder %s28, 0
      %p243 = por %p241, %p242
      %p244 = scmp.ne.s32.totalorder %s230, %s231
      %p245 = scmp.eq.s32.totalorder %s29, 1
      %p246 = por %p244, %p245
      %p248 = scmp.ne.s32.totalorder %s231, %s247
      %p249 = scmp.eq.s32.totalorder %s29, 0
      %p250 = por %p248, %p249
      %p251 = scmp.le.s32.totalorder 1, %s23
      %p252 = scmp.lt.s32.totalorder %s23, 3
      %p253 = pnand %p251, %p252
      %p254 = pneg %p253
      // Predicated region
      $region9: #{tpu_custom_call.1} parent=5 // pred_check
        _
      $region10: #{tpu_custom_call.1} parent=5 // pred_check_branch
        %256 = sbr.rel (%p253) target = $region12
      $region11: #{tpu_custom_call.1} parent=5 // pred_region
        %s257 = ssub.s32 %s23, 1
        // Predicated region
        $region13: #{tpu_custom_call.1} parent=11 // pred_check
          %p258 = pneg %p70
        $region14: #{tpu_custom_call.1} parent=11 // pred_check_branch
          %260 = sbr.rel (%p258) target = $region16
        $region15: #{tpu_custom_call.1} parent=11 // pred_region
          %s262 = ssub.s32 1024, 1024
          %263 = vsyncadd [#allocation6], %s262
          %s264 = sshll.u32 [#allocation5], 4
          %s265 = int_to_ptr.vmem [resolvable:$true] %s264
          %270 = dma.hbm_to_vmem [thread:$0]  %s1, 1024, %s265, [#allocation6], 64, 64, 4
        $region16: #{tpu_custom_call.1} parent=11 // pred_fallthru
          _
        // Predicated region
        $region17: #{tpu_custom_call.1} parent=11 // pred_check
          %p271 = pneg %p91
        $region18: #{tpu_custom_call.1} parent=11 // pred_check_branch
          %273 = sbr.rel (%p271) target = $region20
        $region19: #{tpu_custom_call.1} parent=11 // pred_region
          _
        $region20: #{tpu_custom_call.1} parent=11 // pred_fallthru
          _
        // Predicated region
        $region21: #{tpu_custom_call.1} parent=11 // pred_check
          %p274 = pneg %p112
        $region22: #{tpu_custom_call.1} parent=11 // pred_check_branch
          %276 = sbr.rel (%p274) target = $region24
        $region23: #{tpu_custom_call.1} parent=11 // pred_region
          %s278 = ssub.s32 1024, 1024
          %279 = vsyncadd [#allocation6], %s278
          %s280 = sshll.u32 [#allocation7], 4
          %s281 = int_to_ptr.vmem [resolvable:$true] %s280
          %286 = dma.hbm_to_vmem [thread:$0]  %s3, 1024, %s281, [#allocation6], 64, 64, 4
        $region24: #{tpu_custom_call.1} parent=11 // pred_fallthru
          _
        // Predicated region
        $region25: #{tpu_custom_call.1} parent=11 // pred_check
          %p287 = pneg %p133
        $region26: #{tpu_custom_call.1} parent=11 // pred_check_branch
          %289 = sbr.rel (%p287) target = $region28
        $region27: #{tpu_custom_call.1} parent=11 // pred_region
          _
        $region28: #{tpu_custom_call.1} parent=11 // pred_fallthru
          _
        // Predicated region
        $region29: #{tpu_custom_call.1} parent=11 // pred_check
          %p290 = pneg %p154
        $region30: #{tpu_custom_call.1} parent=11 // pred_check_branch
          %292 = sbr.rel (%p290) target = $region32
        $region31: #{tpu_custom_call.1} parent=11 // pred_region
          %s294 = ssub.s32 1024, 1024
          %295 = vsyncadd [#allocation9], %s294
          %s296 = sshll.u32 [#allocation8], 4
          %s297 = int_to_ptr.vmem [resolvable:$true] %s296
          %302 = dma.hbm_to_vmem [thread:$0]  %s5, 1024, %s297, [#allocation9], 64, 64, 4
        $region32: #{tpu_custom_call.1} parent=11 // pred_fallthru
          _
        // Predicated region
        $region33: #{tpu_custom_call.1} parent=11 // pred_check
          %p303 = pneg %p175
        $region34: #{tpu_custom_call.1} parent=11 // pred_check_branch
          %305 = sbr.rel (%p303) target = $region36
        $region35: #{tpu_custom_call.1} parent=11 // pred_region
          _
        $region36: #{tpu_custom_call.1} parent=11 // pred_fallthru
          _
        // Predicated region
        $region37: #{tpu_custom_call.1} parent=11 // pred_check
          %p306 = pneg %p196
        $region38: #{tpu_custom_call.1} parent=11 // pred_check_branch
          %308 = sbr.rel (%p306) target = $region40
        $region39: #{tpu_custom_call.1} parent=11 // pred_region
          _
        $region40: #{tpu_custom_call.1} parent=11 // pred_fallthru
          _
        // Predicated region
        $region41: #{tpu_custom_call.1} parent=11 // pred_check
          %p309 = pneg %p217
        $region42: #{tpu_custom_call.1} parent=11 // pred_check_branch
          %311 = sbr.rel (%p309) target = $region44
        $region43: #{tpu_custom_call.1} parent=11 // pred_region
          _
        $region44: #{tpu_custom_call.1} parent=11 // pred_fallthru
          _
      $region12: #{tpu_custom_call.1} parent=5 // pred_fallthru
        _
      %p312 = scmp.lt.s32.totalorder %s23, 2
      // Predicated region
      $region45: #{tpu_custom_call.1} parent=5 // pred_check
        %p313 = pneg %p312
      $region46: #{tpu_custom_call.1} parent=5 // pred_check_branch
        %315 = sbr.rel (%p313) target = $region48
      $region47: #{tpu_custom_call.1} parent=5 // pred_region
        // Predicated region
        $region49: #{tpu_custom_call.1} parent=47 // pred_check
          %p316 = pneg %p43
        $region50: #{tpu_custom_call.1} parent=47 // pred_check_branch
          %318 = sbr.rel (%p316) target = $region52
        $region51: #{tpu_custom_call.1} parent=47 // pred_region
          %s319 = sand.u32 %s33, 1
          %s320 = scalar_lea.sflag [#allocation3], %s319
          %s321 = sand.u32 %s33, 1
          %s322 = smul.addr %s321, 4
          %s323 = scalar_lea.vmem [#allocation2], %s322
          %s325 = ssub.s32 64, 64
          %326 = vsyncadd %s320, %s325
          %s327 = smul.addr %s23, 64
          %s328 = scalar_lea.hbm %s0, %s327
          %s330 = sshll.u32 %s323, 4
          %s331 = int_to_ptr.vmem [resolvable:$true] %s330
          %333 = dma.hbm_to_vmem [thread:$0]  %s328, 64, %s331, %s320
        $region52: #{tpu_custom_call.1} parent=47 // pred_fallthru
          _
      $region48: #{tpu_custom_call.1} parent=5 // pred_fallthru
        _
      %p334 = scmp.le.s32.totalorder 1, %s23
      %p335 = scmp.lt.s32.totalorder %s23, 3
      %p336 = pnand %p334, %p335
      %p337 = pneg %p336
      // Predicated region
      $region53: #{tpu_custom_call.1} parent=5 // pred_check
        _
      $region54: #{tpu_custom_call.1} parent=5 // pred_check_branch
        %339 = sbr.rel (%p336) target = $region56
      $region55: #{tpu_custom_call.1} parent=5 // pred_region
        %s340 = ssub.s32 %s23, 1
        %s341 = sand.u32 %s36, 1
        %s342 = scalar_lea.sflag [#allocation3], %s341
        %s343 = sand.u32 %s36, 1
        %s344 = smul.addr %s343, 4
        %s345 = scalar_lea.vmem [#allocation2], %s344
        // Predicated region
        $region57: #{tpu_custom_call.1} parent=55 // pred_check
          %p346 = pneg %p49
        $region58: #{tpu_custom_call.1} parent=55 // pred_check_branch
          %348 = sbr.rel (%p346) target = $region60
        $region59: #{tpu_custom_call.1} parent=55 // pred_region
          %349 = dma.done %s342, 64
        $region60: #{tpu_custom_call.1} parent=55 // pred_fallthru
          _
        // Predicated region
        $region61: #{tpu_custom_call.1} parent=55 // pred_check
          %p350 = pneg %p70
        $region62: #{tpu_custom_call.1} parent=55 // pred_check_branch
          %352 = sbr.rel (%p350) target = $region64
        $region63: #{tpu_custom_call.1} parent=55 // pred_region
          %353 = dma.done [#allocation6], 1024
        $region64: #{tpu_custom_call.1} parent=55 // pred_fallthru
          _
        // Predicated region
        $region65: #{tpu_custom_call.1} parent=55 // pred_check
          %p354 = pneg %p112
        $region66: #{tpu_custom_call.1} parent=55 // pred_check_branch
          %356 = sbr.rel (%p354) target = $region68
        $region67: #{tpu_custom_call.1} parent=55 // pred_region
          %357 = dma.done [#allocation6], 1024
        $region68: #{tpu_custom_call.1} parent=55 // pred_fallthru
          _
        // Predicated region
        $region69: #{tpu_custom_call.1} parent=55 // pred_check
          %p358 = pneg %p154
        $region70: #{tpu_custom_call.1} parent=55 // pred_check_branch
          %360 = sbr.rel (%p358) target = $region72
        $region71: #{tpu_custom_call.1} parent=55 // pred_region
          %361 = dma.done [#allocation9], 1024
        $region72: #{tpu_custom_call.1} parent=55 // pred_fallthru
          _
        %s362 = sand.u32 %s36, 1
        %s363 = scalar_lea.sflag [#allocation3], %s362
        %s364 = sand.u32 %s36, 1
        %s365 = smul.addr %s364, 4
        %s366 = scalar_lea.vmem [#allocation2], %s365
        %p367 = pneg %p49
        %p368 = pneg %p46
        %p369 = pneg %p70
        %p370 = pneg %p67
        %p371 = pneg %p91
        %p372 = pneg %p88
        %p373 = pneg %p112
        %p374 = pneg %p109
        %p375 = pneg %p133
        %p376 = pneg %p130
        %p377 = pneg %p154
        %p378 = pneg %p151
        %p379 = pneg %p175
        %p380 = pneg %p172
        %p381 = pneg %p196
        %p382 = pneg %p193
        %p383 = pneg %p217
        %p384 = pneg %p214
        %p385 = pneg %p243
        %p386 = pneg %p240
        %s387 = sand.u32 %s230, 1
        %s388 = scalar_lea.sflag [#allocation4], %s387
        %s389 = sand.u32 %s230, 1
        %s390 = smul.addr %s389, 4
        %s391 = scalar_lea.vmem [#allocation10], %s390
        %v393 = vld [vmem:[%s345] sm:$0xf]
        %v394 = vunpack.c.l.bf16 %v393
        %v395 = vld [vmem:[#allocation5] sm:$0xf]
        %v396 = vld [vmem:[#allocation5 + $0x4] sm:$0xf]
        %v397 = vld [vmem:[#allocation5 + $0x8] sm:$0xf]
        %v398 = vld [vmem:[#allocation5 + $0xc] sm:$0xf]
        %v399 = vld [vmem:[#allocation5 + $0x10] sm:$0xf]
        %v400 = vld [vmem:[#allocation5 + $0x14] sm:$0xf]
        %v401 = vld [vmem:[#allocation5 + $0x18] sm:$0xf]
        %v402 = vld [vmem:[#allocation5 + $0x1c] sm:$0xf]
        %v403 = vld [vmem:[#allocation5 + $0x20] sm:$0xf]
        %v404 = vld [vmem:[#allocation5 + $0x24] sm:$0xf]
        %v405 = vld [vmem:[#allocation5 + $0x28] sm:$0xf]
        %v406 = vld [vmem:[#allocation5 + $0x2c] sm:$0xf]
        %v407 = vld [vmem:[#allocation5 + $0x30] sm:$0xf]
        %v408 = vld [vmem:[#allocation5 + $0x34] sm:$0xf]
        %v409 = vld [vmem:[#allocation5 + $0x38] sm:$0xf]
        %v410 = vld [vmem:[#allocation5 + $0x3c] sm:$0xf]
        %v411 = vld [vmem:[%s2] sm:$0x1]
        %v413 = vlaneseq
        %v414 = vshrl.u32 %v413, 7
        %v415 = vsub.s32 0, %v414
        %v416 = vrot.slane %v411, %v415
        %v434 = vunpack.c.l.b16 %v395
        %v435 = vunpack.c.l.b16 %v396
        %v436 = vunpack.c.l.b16 %v397
        %v437 = vunpack.c.l.b16 %v398
        %v438 = vunpack.c.l.b16 %v399
        %v439 = vunpack.c.l.b16 %v400
        %v440 = vunpack.c.l.b16 %v401
        %v441 = vunpack.c.l.b16 %v402
        %v442 = vunpack.c.l.b16 %v403
        %v443 = vunpack.c.l.b16 %v404
        %v444 = vunpack.c.l.b16 %v405
        %v445 = vunpack.c.l.b16 %v406
        %v446 = vunpack.c.l.b16 %v407
        %v447 = vunpack.c.l.b16 %v408
        %v448 = vunpack.c.l.b16 %v409
        %v449 = vunpack.c.l.b16 %v410
        %v450 = vpack.c.b16 %v435, %v434
        %v451 = vpack.c.b16 %v437, %v436
        %v452 = vpack.c.b16 %v439, %v438
        %v453 = vpack.c.b16 %v441, %v440
        %v454 = vpack.c.b16 %v443, %v442
        %v455 = vpack.c.b16 %v445, %v444
        %v456 = vpack.c.b16 %v447, %v446
        %v457 = vpack.c.b16 %v449, %v448
        %466 = vmatprep.subr.bf16.mxu0 0
        %467 = vmatpush1.bf16.msra.mxu0 %v450
        %468 = vmatprep.subr.bf16.mxu0 0
        %469 = vmatpush1.bf16.msra.mxu0 %v451
        %470 = vmatprep.subr.bf16.mxu0 0
        %471 = vmatpush1.bf16.msra.mxu0 %v452
        %472 = vmatprep.subr.bf16.mxu0 0
        %473 = vmatpush1.bf16.msra.mxu0 %v453
        %474 = vmatprep.subr.bf16.mxu0 0
        %475 = vmatpush1.bf16.msra.mxu0 %v454
        %476 = vmatprep.subr.bf16.mxu0 0
        %477 = vmatpush1.bf16.msra.mxu0 %v455
        %478 = vmatprep.subr.bf16.mxu0 0
        %479 = vmatpush1.bf16.msra.mxu0 %v456
        %480 = vmatprep.subr.bf16.mxu0 0
        %481 = vmatpush1.bf16.msra.mxu0 %v457
        %482 = vmatprep.subr.bf16.mxu0 0
        %483 = vmatpush1.bf16.msra.mxu0 0
        %484 = vmatprep.subr.bf16.mxu0 0
        %485 = vmatpush1.bf16.msra.mxu0 0
        %486 = vmatprep.subr.bf16.mxu0 0
        %487 = vmatpush1.bf16.msra.mxu0 0
        %488 = vmatprep.subr.bf16.mxu0 0
        %489 = vmatpush1.bf16.msra.mxu0 0
        %490 = vmatprep.subr.bf16.mxu0 0
        %491 = vmatpush1.bf16.msra.mxu0 0
        %492 = vmatprep.subr.bf16.mxu0 0
        %493 = vmatpush1.bf16.msra.mxu0 0
        %494 = vmatprep.subr.bf16.mxu0 0
        %495 = vmatpush1.bf16.msra.mxu0 0
        %496 = vmatprep.subr.bf16.mxu0 0
        %497 = vmatpush1.bf16.msra.mxu0 0
        %498 = vmatprep.mubr.bf16.mxu0 0
        %499 = vmatmul.mubr.bf16.gmra.mrb[0].mxu0 %v393
        %v500 = vpop.f32.mrb[0].mxu0
        %v501 = vadd.f32 %v416, %v500
        %v502 = vpop.f32.mrb[0].mxu0
        %v503 = vpop.f32.mrb[0].mxu0
        %v504 = vpop.f32.mrb[0].mxu0
        %505 = vdwg.mxu0
        %v506 = vmax.f32 %v501, 0.0
        %v507 = vpack.c.bf16 %v506, %v506
        %v508 = vld [vmem:[#allocation7] sm:$0xf]
        %v509 = vld [vmem:[#allocation7 + $0x4] sm:$0xf]
        %v510 = vld [vmem:[#allocation7 + $0x8] sm:$0xf]
        %v511 = vld [vmem:[#allocation7 + $0xc] sm:$0xf]
        %v512 = vld [vmem:[#allocation7 + $0x10] sm:$0xf]
        %v513 = vld [vmem:[#allocation7 + $0x14] sm:$0xf]
        %v514 = vld [vmem:[#allocation7 + $0x18] sm:$0xf]
        %v515 = vld [vmem:[#allocation7 + $0x1c] sm:$0xf]
        %v516 = vld [vmem:[#allocation7 + $0x20] sm:$0xf]
        %v517 = vld [vmem:[#allocation7 + $0x24] sm:$0xf]
        %v518 = vld [vmem:[#allocation7 + $0x28] sm:$0xf]
        %v519 = vld [vmem:[#allocation7 + $0x2c] sm:$0xf]
        %v520 = vld [vmem:[#allocation7 + $0x30] sm:$0xf]
        %v521 = vld [vmem:[#allocation7 + $0x34] sm:$0xf]
        %v522 = vld [vmem:[#allocation7 + $0x38] sm:$0xf]
        %v523 = vld [vmem:[#allocation7 + $0x3c] sm:$0xf]
        %v524 = vld [vmem:[%s4] sm:$0x1]
        %v526 = vlaneseq
        %v527 = vshrl.u32 %v526, 7
        %v528 = vsub.s32 0, %v527
        %v529 = vrot.slane %v524, %v528
        %v547 = vunpack.c.l.b16 %v508
        %v548 = vunpack.c.l.b16 %v509
        %v549 = vunpack.c.l.b16 %v510
        %v550 = vunpack.c.l.b16 %v511
        %v551 = vunpack.c.l.b16 %v512
        %v552 = vunpack.c.l.b16 %v513
        %v553 = vunpack.c.l.b16 %v514
        %v554 = vunpack.c.l.b16 %v515
        %v555 = vunpack.c.l.b16 %v516
        %v556 = vunpack.c.l.b16 %v517
        %v557 = vunpack.c.l.b16 %v518
        %v558 = vunpack.c.l.b16 %v519
        %v559 = vunpack.c.l.b16 %v520
        %v560 = vunpack.c.l.b16 %v521
        %v561 = vunpack.c.l.b16 %v522
        %v562 = vunpack.c.l.b16 %v523
        %v563 = vpack.c.b16 %v548, %v547
        %v564 = vpack.c.b16 %v550, %v549
        %v565 = vpack.c.b16 %v552, %v551
        %v566 = vpack.c.b16 %v554, %v553
        %v567 = vpack.c.b16 %v556, %v555
        %v568 = vpack.c.b16 %v558, %v557
        %v569 = vpack.c.b16 %v560, %v559
        %v570 = vpack.c.b16 %v562, %v561
        %579 = vmatprep.subr.bf16.mxu0 0
        %580 = vmatpush1.bf16.msra.mxu0 %v563
        %581 = vmatprep.subr.bf16.mxu0 0
        %582 = vmatpush1.bf16.msra.mxu0 %v564
        %583 = vmatprep.subr.bf16.mxu0 0
        %584 = vmatpush1.bf16.msra.mxu0 %v565
        %585 = vmatprep.subr.bf16.mxu0 0
        %586 = vmatpush1.bf16.msra.mxu0 %v566
        %587 = vmatprep.subr.bf16.mxu0 0
        %588 = vmatpush1.bf16.msra.mxu0 %v567
        %589 = vmatprep.subr.bf16.mxu0 0
        %590 = vmatpush1.bf16.msra.mxu0 %v568
        %591 = vmatprep.subr.bf16.mxu0 0
        %592 = vmatpush1.bf16.msra.mxu0 %v569
        %593 = vmatprep.subr.bf16.mxu0 0
        %594 = vmatpush1.bf16.msra.mxu0 %v570
        %595 = vmatprep.subr.bf16.mxu0 0
        %596 = vmatpush1.bf16.msra.mxu0 0
        %597 = vmatprep.subr.bf16.mxu0 0
        %598 = vmatpush1.bf16.msra.mxu0 0
        %599 = vmatprep.subr.bf16.mxu0 0
        %600 = vmatpush1.bf16.msra.mxu0 0
        %601 = vmatprep.subr.bf16.mxu0 0
        %602 = vmatpush1.bf16.msra.mxu0 0
        %603 = vmatprep.subr.bf16.mxu0 0
        %604 = vmatpush1.bf16.msra.mxu0 0
        %605 = vmatprep.subr.bf16.mxu0 0
        %606 = vmatpush1.bf16.msra.mxu0 0
        %607 = vmatprep.subr.bf16.mxu0 0
        %608 = vmatpush1.bf16.msra.mxu0 0
        %609 = vmatprep.subr.bf16.mxu0 0
        %610 = vmatpush1.bf16.msra.mxu0 0
        %611 = vmatprep.mubr.bf16.mxu0 0
        %612 = vmatmul.mubr.bf16.gmra.mrb[0].mxu0 %v507
        %v613 = vpop.f32.mrb[0].mxu0
        %v614 = vadd.f32 %v529, %v613
        %v615 = vpop.f32.mrb[0].mxu0
        %v616 = vpop.f32.mrb[0].mxu0
        %v617 = vpop.f32.mrb[0].mxu0
        %618 = vdwg.mxu0
        %v619 = vmax.f32 %v614, 0.0
        %v620 = vpack.c.bf16 %v619, %v619
        %v621 = vld [vmem:[#allocation8] sm:$0xf]
        %v622 = vld [vmem:[#allocation8 + $0x4] sm:$0xf]
        %v623 = vld [vmem:[#allocation8 + $0x8] sm:$0xf]
        %v624 = vld [vmem:[#allocation8 + $0xc] sm:$0xf]
        %v625 = vld [vmem:[#allocation8 + $0x10] sm:$0xf]
        %v626 = vld [vmem:[#allocation8 + $0x14] sm:$0xf]
        %v627 = vld [vmem:[#allocation8 + $0x18] sm:$0xf]
        %v628 = vld [vmem:[#allocation8 + $0x1c] sm:$0xf]
        %v629 = vld [vmem:[#allocation8 + $0x20] sm:$0xf]
        %v630 = vld [vmem:[#allocation8 + $0x24] sm:$0xf]
        %v631 = vld [vmem:[#allocation8 + $0x28] sm:$0xf]
        %v632 = vld [vmem:[#allocation8 + $0x2c] sm:$0xf]
        %v633 = vld [vmem:[#allocation8 + $0x30] sm:$0xf]
        %v634 = vld [vmem:[#allocation8 + $0x34] sm:$0xf]
        %v635 = vld [vmem:[#allocation8 + $0x38] sm:$0xf]
        %v636 = vld [vmem:[#allocation8 + $0x3c] sm:$0xf]
        %v637 = vld [vmem:[%s6] sm:$0x1]
        %v639 = vlaneseq
        %v640 = vshrl.u32 %v639, 7
        %v641 = vsub.s32 0, %v640
        %v642 = vrot.slane %v637, %v641
        %v660 = vunpack.c.l.b16 %v621
        %v661 = vunpack.c.l.b16 %v622
        %v662 = vunpack.c.l.b16 %v623
        %v663 = vunpack.c.l.b16 %v624
        %v664 = vunpack.c.l.b16 %v625
        %v665 = vunpack.c.l.b16 %v626
        %v666 = vunpack.c.l.b16 %v627
        %v667 = vunpack.c.l.b16 %v628
        %v668 = vunpack.c.l.b16 %v629
        %v669 = vunpack.c.l.b16 %v630
        %v670 = vunpack.c.l.b16 %v631
        %v671 = vunpack.c.l.b16 %v632
        %v672 = vunpack.c.l.b16 %v633
        %v673 = vunpack.c.l.b16 %v634
        %v674 = vunpack.c.l.b16 %v635
        %v675 = vunpack.c.l.b16 %v636
        %v676 = vpack.c.b16 %v661, %v660
        %v677 = vpack.c.b16 %v663, %v662
        %v678 = vpack.c.b16 %v665, %v664
        %v679 = vpack.c.b16 %v667, %v666
        %v680 = vpack.c.b16 %v669, %v668
        %v681 = vpack.c.b16 %v671, %v670
        %v682 = vpack.c.b16 %v673, %v672
        %v683 = vpack.c.b16 %v675, %v674
        %692 = vmatprep.subr.bf16.mxu0 0
        %693 = vmatpush1.bf16.msra.mxu0 %v676
        %694 = vmatprep.subr.bf16.mxu0 0
        %695 = vmatpush1.bf16.msra.mxu0 %v677
        %696 = vmatprep.subr.bf16.mxu0 0
        %697 = vmatpush1.bf16.msra.mxu0 %v678
        %698 = vmatprep.subr.bf16.mxu0 0
        %699 = vmatpush1.bf16.msra.mxu0 %v679
        %700 = vmatprep.subr.bf16.mxu0 0
        %701 = vmatpush1.bf16.msra.mxu0 %v680
        %702 = vmatprep.subr.bf16.mxu0 0
        %703 = vmatpush1.bf16.msra.mxu0 %v681
        %704 = vmatprep.subr.bf16.mxu0 0
        %705 = vmatpush1.bf16.msra.mxu0 %v682
        %706 = vmatprep.subr.bf16.mxu0 0
        %707 = vmatpush1.bf16.msra.mxu0 %v683
        %708 = vmatprep.subr.bf16.mxu0 0
        %709 = vmatpush1.bf16.msra.mxu0 0
        %710 = vmatprep.subr.bf16.mxu0 0
        %711 = vmatpush1.bf16.msra.mxu0 0
        %712 = vmatprep.subr.bf16.mxu0 0
        %713 = vmatpush1.bf16.msra.mxu0 0
        %714 = vmatprep.subr.bf16.mxu0 0
        %715 = vmatpush1.bf16.msra.mxu0 0
        %716 = vmatprep.subr.bf16.mxu0 0
        %717 = vmatpush1.bf16.msra.mxu0 0
        %718 = vmatprep.subr.bf16.mxu0 0
        %719 = vmatpush1.bf16.msra.mxu0 0
        %720 = vmatprep.subr.bf16.mxu0 0
        %721 = vmatpush1.bf16.msra.mxu0 0
        %722 = vmatprep.subr.bf16.mxu0 0
        %723 = vmatpush1.bf16.msra.mxu0 0
        %724 = vmatprep.mubr.bf16.mxu0 0
        %725 = vmatmul.mubr.bf16.gmra.mrb[0].mxu0 %v620
        %v726 = vpop.f32.mrb[0].mxu0
        %v727 = vadd.f32 %v642, %v726
        %v728 = vpop.f32.mrb[0].mxu0
        %v729 = vpop.f32.mrb[0].mxu0
        %v730 = vpop.f32.mrb[0].mxu0
        %731 = vdwg.mxu0
        %v732 = vadd.f32 %v727, %v394
        %733 = vadd.xlane.f32.xlu0 %v732
        %v734 = vpop.xlane.xlu0 %733
        %v735 = vrcp.pop 128.0
        %v736 = vmul.f32 %v734, %v735
        %v737 = vsub.f32 %v732, %v736
        %v738 = vmul.f32 %v737, %v737
        %739 = vadd.xlane.f32.xlu0 %v738
        %v740 = vpop.xlane.xlu0 %739
        %v741 = vmul.f32 %v740, %v735
        %v742 = vadd.f32 %v741, 1e-05
        %v743 = vrsqrt.pop %v742
        %v744 = vmul.f32 %v737, %v743
        %v745 = vld [vmem:[%s7] sm:$0x1]
        %v747 = vlaneseq
        %v748 = vshrl.u32 %v747, 7
        %v749 = vsub.s32 0, %v748
        %v750 = vrot.slane %v745, %v749
        %v752 = vmul.f32 %v744, %v750
        %v753 = vld [vmem:[%s8] sm:$0x1]
        %v755 = vlaneseq
        %v756 = vshrl.u32 %v755, 7
        %v757 = vsub.s32 0, %v756
        %v758 = vrot.slane %v753, %v757
        %v760 = vadd.f32 %v752, %v758
        %v761 = vpack.c.bf16 %v760, %v760
        %762 = vst [vmem:[%s391] sm:$0xf] %v761
        %s763 = sand.u32 %s230, 1
        %s764 = scalar_lea.sflag [#allocation4], %s763
        %s765 = sand.u32 %s230, 1
        %s766 = smul.addr %s765, 4
        %s767 = scalar_lea.vmem [#allocation10], %s766
        // Predicated region
        $region73: #{tpu_custom_call.1} parent=55 // pred_check
          %p768 = pneg %p240
        $region74: #{tpu_custom_call.1} parent=55 // pred_check_branch
          %770 = sbr.rel (%p768) target = $region76
        $region75: #{tpu_custom_call.1} parent=55 // pred_region
          %s772 = ssub.s32 64, 64
          %773 = vsyncadd %s764, %s772
          %s774 = smul.addr %s28, 64
          %s775 = scalar_lea.hbm %s9, %s774
          %s777 = sshll.u32 %s767, 4
          %s778 = int_to_ptr.vmem [resolvable:$true] %s777
          %780 = dma.vmem_to_hbm [thread:$0]  %s778, 64, %s775, %s764
        $region76: #{tpu_custom_call.1} parent=55 // pred_fallthru
          _
      $region56: #{tpu_custom_call.1} parent=5 // pred_fallthru
        _
      %p781 = scmp.le.s32.totalorder 2, %s23
      // Predicated region
      $region77: #{tpu_custom_call.1} parent=5 // pred_check
        %p782 = pneg %p781
      $region78: #{tpu_custom_call.1} parent=5 // pred_check_branch
        %784 = sbr.rel (%p782) target = $region80
      $region79: #{tpu_custom_call.1} parent=5 // pred_region
        %s785 = ssub.s32 %s23, 2
        // Predicated region
        $region81: #{tpu_custom_call.1} parent=79 // pred_check
          %p786 = pneg %p246
        $region82: #{tpu_custom_call.1} parent=79 // pred_check_branch
          %788 = sbr.rel (%p786) target = $region84
        $region83: #{tpu_custom_call.1} parent=79 // pred_region
          %s789 = sand.u32 %s231, 1
          %s790 = scalar_lea.sflag [#allocation4], %s789
          %s791 = sand.u32 %s231, 1
          %s792 = smul.addr %s791, 4
          %s793 = scalar_lea.vmem [#allocation10], %s792
          %794 = dma.done %s790, 64
        $region84: #{tpu_custom_call.1} parent=79 // pred_fallthru
          _
      $region80: #{tpu_custom_call.1} parent=5 // pred_fallthru
        _
    $region6: #{tpu_custom_call.1} parent=1 // loop_footer
      %s27 = sadd.s32 1, %s23
    $region7: #{tpu_custom_call.1} parent=1 // loop_footer_branch
      %22 = sbr.rel target = $region3
    $region8: #{tpu_custom_call.1} parent=1 // loop_exit
      _
    %795 = vsyncpa [#allocation3], 1
    %s796 = scalar_lea.sflag [#allocation3], 1
    %797 = vsyncpa %s796, 1
    %798 = vsyncpa [#allocation6], 1
    %799 = vsyncpa [#allocation9], 1
    %800 = vsyncpa [#allocation4], 1
    %s801 = scalar_lea.sflag [#allocation4], 1
    %802 = vsyncpa %s801, 1

</llo_original>
